<compile_context>
chip_gen: v7x
topology: tpu7x:2x2x1
jax: 0.10.0
libtpu: 0.0.40
codegen_flags: <defaults>
</compile_context>

<pallas_src>
import functools

import jax
import jax.numpy as jnp
from jax.experimental import pallas as pl
from jax.experimental.pallas import tpu as pltpu


def _loss_sums_kernel(logits_ref, labels_ref, sums_ref, *,
                      ignore_index, hw, tile, tiles_per_par, mask_tail):
    """Accumulates loss partial sums over pixel tiles (classes on sublanes).

    sums_ref block is (1, 1, C, 8) with lanes:
      0: dice intersection   sum_p softmax * onehot   (valid pixels, per class)
      1: softmax sum         sum_p softmax            (valid pixels, per class)
      2: target sum          sum_p onehot             (valid pixels, per class)
      3: NLL numerator       sum_p -logp[label]       (scalar, stored at row 0)
      4: smoothing numerator sum_p -sum_c logp_c      (scalar, stored at row 0)
    """
    j = pl.program_id(2)

    @pl.when(j == 0)
    def _():
        sums_ref[...] = jnp.zeros_like(sums_ref)

    x = logits_ref[0].astype(jnp.float32)        # (C, T): classes on sublanes, pixels on lanes
    lbl = labels_ref[0].astype(jnp.int32)        # (1, T)
    c, t = x.shape

    valid = lbl != ignore_index                  # (1, T)
    if mask_tail:                                # static: only compiled for ragged spatial tails
        p = pl.program_id(1)
        pix = (p * tiles_per_par + j) * tile + jax.lax.broadcasted_iota(jnp.int32, (1, t), 1)
        in_bounds = pix < hw
        valid = jnp.logical_and(valid, in_bounds)
        x = jnp.where(in_bounds, x, 0.0)         # sanitize out-of-bounds garbage

    v = valid.astype(jnp.float32)                # (1, T)

    # Numerically stable log-sum-exp over the class (sublane) axis; exp() once.
    m = jnp.max(x, axis=0, keepdims=True)        # (1, T)   XLU
    z = x - m                                    # (C, T)
    e = jnp.exp(z)                               # (C, T)   single EUP pass
    s = jnp.sum(e, axis=0, keepdims=True)        # (1, T)   XLU
    inv_s = 1.0 / s                              # (1, T)   exact divide (tiny)
    lse = jnp.log(s) + m                         # (1, T)   logsumexp(x)
    prob = e * inv_s                             # (C, T)   softmax, reuses e

    # Masked one-hot target (valid mask folded directly into the select).
    cls = jax.lax.broadcasted_iota(jnp.int32, (c, t), 0)
    t_m = jnp.where(cls == lbl, v, 0.0)          # (C, T)

    # --- SoftCE pieces: per-pixel (1,T), reduced to scalars ---
    x_lbl = jnp.sum(x * t_m, axis=0, keepdims=True)                  # (1, T) = x[label]*valid
    x_sum = jnp.sum(x, axis=0, keepdims=True)                        # (1, T)
    nll_s = jnp.sum(lse * v - x_lbl, axis=1, keepdims=True)          # (1, 1)
    smooth_s = jnp.sum((jnp.float32(c) * lse - x_sum) * v,
                       axis=1, keepdims=True)                        # (1, 1)

    # --- Dice pieces: per class ---
    inter_c = jnp.sum(prob * t_m, axis=1, keepdims=True)             # (C, 1)
    psum_c = jnp.sum(prob * v, axis=1, keepdims=True)                # (C, 1)
    tsum_c = jnp.sum(t_m, axis=1, keepdims=True)                     # (C, 1)

    # One merged (C, 8) update: lanes [inter, psum, tsum, nll, smooth, 0, 0, 0].
    lane = jax.lax.broadcasted_iota(jnp.int32, (c, 8), 1)
    row = jax.lax.broadcasted_iota(jnp.int32, (c, 8), 0)
    upd = jnp.where(lane == 0, inter_c, 0.0)
    upd = upd + jnp.where(lane == 1, psum_c, 0.0)
    upd = upd + jnp.where(lane == 2, tsum_c, 0.0)
    upd = upd + jnp.where(jnp.logical_and(lane == 3, row == 0), nll_s, 0.0)
    upd = upd + jnp.where(jnp.logical_and(lane == 4, row == 0), smooth_s, 0.0)
    sums_ref[...] += upd.reshape(1, 1, c, 8)


def _pick_tile(hw, cap):
    """Largest multiple-of-128 pixel tile <= cap, preferring exact divisors of hw."""
    cap = max(128, min(cap, pl.cdiv(hw, 128) * 128))
    if hw % 128 == 0:
        q = hw // 128
        for d in range(min(q, cap // 128), 0, -1):
            if q % d == 0:
                tile = 128 * d
                if 4 * tile >= cap:        # close enough to the cap: take it, no tail masking
                    return tile, False
                break
    return cap, (hw % cap != 0)


def baformer_loss(logits, labels, *, ignore_index=255, smooth_factor=0.05,
                  dice_smooth=0.05, dice_eps=1e-7, max_tile=65536,
                  vmem_budget_bytes=24 * 1024 * 1024):
    """BAFormerLoss main path: SoftCrossEntropy(0.05) + DiceLoss(multiclass, 0.05).

    logits: (N, C, H, W) float (f32 or bf16), labels: (N, H, W) int.
    """
    n, c, h, w = logits.shape
    hw = h * w

    # Free views of contiguous NCHW — no transpose, no cast, no pad in HBM.
    x = logits.reshape(n, c, hw)
    y = labels.reshape(n, 1, hw)
    if y.dtype.itemsize > 4:                 # keep labels narrow; only shrink 64-bit
        y = y.astype(jnp.int32)

    # Tile sized so the double-buffered input working set stays within the budget
    # (fits v7x's 64 MiB VMEM with headroom; larger than v5e's 16 MiB default).
    bytes_per_pixel = c * x.dtype.itemsize + y.dtype.itemsize
    cap = (vmem_budget_bytes // (2 * bytes_per_pixel)) // 128 * 128
    cap = max(128, min(cap, max_tile))
    tile, mask_tail = _pick_tile(hw, cap)
    num_tiles = pl.cdiv(hw, tile)

    # Opportunistic 2-way pixel split so both v7x TensorCores work even at N=1.
    n_par = 2 if (num_tiles >= 2 and num_tiles % 2 == 0) else 1
    tiles_per_par = num_tiles // n_par

    kernel = functools.partial(
        _loss_sums_kernel, ignore_index=ignore_index, hw=hw, tile=tile,
        tiles_per_par=tiles_per_par, mask_tail=mask_tail)

    cost = pl.CostEstimate(
        flops=10 * n * c * hw,
        transcendentals=n * (c + 1) * hw,
        bytes_accessed=(n * c * hw * x.dtype.itemsize
                        + n * hw * y.dtype.itemsize
                        + n * n_par * c * 8 * 4))

    sums = pl.pallas_call(
        kernel,
        out_shape=jax.ShapeDtypeStruct((n, n_par, c, 8), jnp.float32),
        grid=(n, n_par, tiles_per_par),
        in_specs=[
            pl.BlockSpec((1, c, tile), lambda i, p, j: (i, 0, p * tiles_per_par + j)),
            pl.BlockSpec((1, 1, tile), lambda i, p, j: (i, 0, p * tiles_per_par + j)),
        ],
        out_specs=pl.BlockSpec((1, 1, c, 8), lambda i, p, j: (i, p, 0, 0)),
        compiler_params=pltpu.CompilerParams(
            dimension_semantics=("parallel", "parallel", "arbitrary"),
            vmem_limit_bytes=48 * 1024 * 1024),
        cost_estimate=cost,
    )(x, y)

    inter_c = jnp.sum(sums[..., 0], axis=(0, 1))
    psum_c = jnp.sum(sums[..., 1], axis=(0, 1))
    tsum_c = jnp.sum(sums[..., 2], axis=(0, 1))
    nll_sum = jnp.sum(sums[..., 3])
    smooth_sum = jnp.sum(sums[..., 4])

    # --- SoftCrossEntropyLoss (label_smoothed_nll_loss, reduction="mean") ---
    n_pix = jnp.float32(n * hw)                   # mean over ALL pixels (ignored count as 0)
    ce_loss = ((1.0 - smooth_factor) * nll_sum
               + (smooth_factor / c) * smooth_sum) / n_pix

    # --- DiceLoss (multiclass, from_logits, dims=(0,2) => global per-class sums) ---
    card_c = psum_c + tsum_c
    score = (2.0 * inter_c + dice_smooth) / jnp.maximum(card_c + dice_smooth, dice_eps)
    dice_loss = jnp.mean((1.0 - score) * (tsum_c > 0).astype(jnp.float32))

    # JointLoss with weights (1.0, 1.0)
    return ce_loss + dice_loss


def _reference_loss(logits, labels, ignore_index=255, smooth_factor=0.05,
                    dice_smooth=0.05, dice_eps=1e-7):
    """Pure-JAX reference mirroring the PyTorch semantics (for verification)."""
    n, c, h, w = logits.shape
    x = logits.astype(jnp.float32)
    logp = jax.nn.log_softmax(x, axis=1)                             # (N, C, H, W)
    valid = (labels != ignore_index)
    safe_lbl = jnp.where(valid, labels, 0).astype(jnp.int32)
    onehot = jax.nn.one_hot(safe_lbl, c, axis=1, dtype=jnp.float32)  # (N, C, H, W)
    nll = -jnp.sum(logp * onehot, axis=1) * valid
    smooth = -jnp.sum(logp, axis=1) * valid
    ce = (1.0 - smooth_factor) * jnp.mean(nll) + (smooth_factor / c) * jnp.mean(smooth)

    prob = jnp.exp(logp)
    vmask = valid[:, None, :, :].astype(jnp.float32)
    p_m = prob * vmask
    t_m = onehot * vmask
    inter = jnp.sum(p_m * t_m, axis=(0, 2, 3))
    card = jnp.sum(p_m + t_m, axis=(0, 2, 3))
    tsum = jnp.sum(t_m, axis=(0, 2, 3))
    score = (2.0 * inter + dice_smooth) / jnp.maximum(card + dice_smooth, dice_eps)
    dice = jnp.mean((1.0 - score) * (tsum > 0).astype(jnp.float32))
    return ce + dice


if __name__ == "__main__":
    key = jax.random.PRNGKey(0)
    k1, k2, k3 = jax.random.split(key, 3)

    # Case 1: base shapes, f32 logits, exact-divisor tile path.
    N, C, H, W = 2, 6, 16, 16
    logits = jax.random.normal(k1, (N, C, H, W), dtype=jnp.float32) * 2.0
    labels = jax.random.randint(k2, (N, H, W), 0, C, dtype=jnp.int32)
    ignore_mask = jax.random.bernoulli(k3, 0.1, (N, H, W))
    labels = jnp.where(ignore_mask, jnp.int32(255), labels)

    loss = jax.block_until_ready(baformer_loss(logits, labels))
    ref = jax.block_until_ready(_reference_loss(logits, labels))
    assert jnp.allclose(loss, ref, rtol=1e-4, atol=1e-4), (loss, ref)

    # Case 2: ragged spatial size -> exercises the masked-tail path.
    H2, W2 = 7, 9
    logits2 = jax.random.normal(k1, (N, C, H2, W2), dtype=jnp.float32)
    labels2 = jax.random.randint(k2, (N, H2, W2), 0, C, dtype=jnp.int32)
    labels2 = jnp.where(jax.random.bernoulli(k3, 0.1, (N, H2, W2)),
                        jnp.int32(255), labels2)
    loss2 = jax.block_until_ready(baformer_loss(logits2, labels2))
    ref2 = jax.block_until_ready(_reference_loss(logits2, labels2))
    assert jnp.allclose(loss2, ref2, rtol=1e-4, atol=1e-4), (loss2, ref2)

    # Case 3: bf16 logits + forced small tile -> exercises the 2-way pixel split.
    logits3 = logits.astype(jnp.bfloat16)
    loss3 = jax.block_until_ready(baformer_loss(logits3, labels, max_tile=128))
    ref3 = jax.block_until_ready(_reference_loss(logits3, labels))
    assert jnp.allclose(loss3, ref3, rtol=1e-3, atol=1e-3), (loss3, ref3)

    print("KERNEL_OK")
</pallas_src>

<mosaic_0001>
module attributes {stable_mosaic.version = 11 : i64} {
  func.func @_loss_sums_kernel(%arg0: i32, %arg1: i32, %arg2: i32, %arg3: memref<1x6x256xf32, #tpu.memory_space<vmem>>, %arg4: memref<1x1x256xi32, #tpu.memory_space<vmem>>, %arg5: memref<1x1x6x8xf32, #tpu.memory_space<vmem>>) attributes {dimension_semantics = [#tpu.dimension_semantics<parallel>, #tpu.dimension_semantics<parallel>, #tpu.dimension_semantics<arbitrary>], iteration_bounds = array<i64: 2, 1, 1>, scalar_prefetch = 0 : i64, scratch_operands = 0 : i64, tpu.core_type = #tpu.core_type<tc>, window_params = [{transform_indices = @transform_0, window_bounds = array<i64: 1, 6, 256>}, {transform_indices = @transform_1, window_bounds = array<i64: 1, 1, 256>}, {transform_indices = @transform_2, window_bounds = array<i64: 1, 1, 6, 8>}]} {
    %c0_i32 = arith.constant 0 : i32
    %0 = arith.cmpi eq, %arg2, %c0_i32 : i32
    %1 = arith.extui %0 : i1 to i32
    %c0_i32_0 = arith.constant 0 : i32
    %2 = arith.cmpi ne, %1, %c0_i32_0 : i32
    scf.if %2 {
      %cst_33 = arith.constant 0.000000e+00 : f32
      %101 = vector.broadcast %cst_33 : f32 to vector<1x1x6x8xf32>
      %c0_34 = arith.constant 0 : index
      %c0_35 = arith.constant 0 : index
      %c0_36 = arith.constant 0 : index
      %c0_37 = arith.constant 0 : index
      %102 = vector.load %arg5[%c0_34, %c0_35, %c0_36, %c0_37] : memref<1x1x6x8xf32, #tpu.memory_space<vmem>>, vector<1x1x6x8xf32>
      tpu.vector_store %arg5[%c0_34, %c0_35, %c0_36, %c0_37], %101 {strides = array<i32>} : memref<1x1x6x8xf32, #tpu.memory_space<vmem>>, vector<1x1x6x8xf32>,
    } else {
    }
    %c0 = arith.constant 0 : index
    %c0_1 = arith.constant 0 : index
    %c0_2 = arith.constant 0 : index
    %3 = vector.load %arg3[%c0, %c0_1, %c0_2] : memref<1x6x256xf32, #tpu.memory_space<vmem>>, vector<1x6x256xf32>
    %4 = vector.shape_cast %3 : vector<1x6x256xf32> to vector<6x256xf32>
    %c0_3 = arith.constant 0 : index
    %c0_4 = arith.constant 0 : index
    %c0_5 = arith.constant 0 : index
    %5 = vector.load %arg4[%c0_3, %c0_4, %c0_5] : memref<1x1x256xi32, #tpu.memory_space<vmem>>, vector<1x1x256xi32>
    %6 = vector.shape_cast %5 : vector<1x1x256xi32> to vector<1x256xi32>
    %c255_i32 = arith.constant 255 : i32
    %7 = vector.broadcast %c255_i32 : i32 to vector<1x256xi32>
    %8 = arith.cmpi ne, %6, %7 : vector<1x256xi32>
    %9 = arith.extui %8 : vector<1x256xi1> to vector<1x256xi32>
    %10 = arith.sitofp %9 : vector<1x256xi32> to vector<1x256xf32>
    %cst = arith.constant dense<0xFF800000> : vector<256xf32>
    %11 = vector.multi_reduction <maximumf>, %4, %cst [0] : vector<6x256xf32> to vector<256xf32>
    %12 = vector.shape_cast %11 : vector<256xf32> to vector<1x256xf32>
    %13 = vector.broadcast %12 : vector<1x256xf32> to vector<6x256xf32>
    %14 = arith.subf %4, %13 : vector<6x256xf32>
    %15 = math.exp %14 : vector<6x256xf32>
    %cst_6 = arith.constant dense<0.000000e+00> : vector<256xf32>
    %16 = vector.multi_reduction <add>, %15, %cst_6 [0] : vector<6x256xf32> to vector<256xf32>
    %17 = vector.shape_cast %16 : vector<256xf32> to vector<1x256xf32>
    %cst_7 = arith.constant 1.000000e+00 : f32
    %18 = vector.broadcast %cst_7 : f32 to vector<1x256xf32>
    %19 = arith.divf %18, %17 : vector<1x256xf32>
    %20 = math.log %17 : vector<1x256xf32>
    %21 = arith.addf %20, %12 : vector<1x256xf32>
    %22 = vector.broadcast %19 : vector<1x256xf32> to vector<6x256xf32>
    %23 = arith.mulf %15, %22 : vector<6x256xf32>
    %24 = tpu.iota {dimensions = array<i32: 0>} : vector<6x256xi32>
    %25 = vector.broadcast %6 : vector<1x256xi32> to vector<6x256xi32>
    %26 = arith.cmpi eq, %24, %25 : vector<6x256xi32>
    %cst_8 = arith.constant 0.000000e+00 : f32
    %27 = vector.shape_cast %10 : vector<1x256xf32> to vector<1x256xf32>
    %28 = vector.broadcast %27 : vector<1x256xf32> to vector<6x256xf32>
    %29 = vector.broadcast %cst_8 : f32 to vector<6x256xf32>
    %30 = arith.select %26, %28, %29 : vector<6x256xi1>, vector<6x256xf32>
    %31 = arith.mulf %4, %30 : vector<6x256xf32>
    %cst_9 = arith.constant dense<0.000000e+00> : vector<256xf32>
    %32 = vector.multi_reduction <add>, %31, %cst_9 [0] : vector<6x256xf32> to vector<256xf32>
    %33 = vector.shape_cast %32 : vector<256xf32> to vector<1x256xf32>
    %cst_10 = arith.constant dense<0.000000e+00> : vector<256xf32>
    %34 = vector.multi_reduction <add>, %4, %cst_10 [0] : vector<6x256xf32> to vector<256xf32>
    %35 = vector.shape_cast %34 : vector<256xf32> to vector<1x256xf32>
    %36 = arith.mulf %21, %10 : vector<1x256xf32>
    %37 = arith.subf %36, %33 : vector<1x256xf32>
    %cst_11 = arith.constant dense<0.000000e+00> : vector<1xf32>
    %38 = vector.multi_reduction <add>, %37, %cst_11 [1] : vector<1x256xf32> to vector<1xf32>
    %39 = vector.shape_cast %38 : vector<1xf32> to vector<1x1xf32>
    %cst_12 = arith.constant 6.000000e+00 : f32
    %40 = vector.broadcast %cst_12 : f32 to vector<1x256xf32>
    %41 = arith.mulf %40, %21 : vector<1x256xf32>
    %42 = arith.subf %41, %35 : vector<1x256xf32>
    %43 = arith.mulf %42, %10 : vector<1x256xf32>
    %cst_13 = arith.constant dense<0.000000e+00> : vector<1xf32>
    %44 = vector.multi_reduction <add>, %43, %cst_13 [1] : vector<1x256xf32> to vector<1xf32>
    %45 = vector.shape_cast %44 : vector<1xf32> to vector<1x1xf32>
    %46 = arith.mulf %23, %30 : vector<6x256xf32>
    %cst_14 = arith.constant dense<0.000000e+00> : vector<6xf32>
    %47 = vector.multi_reduction <add>, %46, %cst_14 [1] : vector<6x256xf32> to vector<6xf32>
    %48 = vector.shape_cast %47 : vector<6xf32> to vector<6x1xf32>
    %49 = vector.broadcast %10 : vector<1x256xf32> to vector<6x256xf32>
    %50 = arith.mulf %23, %49 : vector<6x256xf32>
    %cst_15 = arith.constant dense<0.000000e+00> : vector<6xf32>
    %51 = vector.multi_reduction <add>, %50, %cst_15 [1] : vector<6x256xf32> to vector<6xf32>
    %52 = vector.shape_cast %51 : vector<6xf32> to vector<6x1xf32>
    %cst_16 = arith.constant dense<0.000000e+00> : vector<6xf32>
    %53 = vector.multi_reduction <add>, %30, %cst_16 [1] : vector<6x256xf32> to vector<6xf32>
    %54 = vector.shape_cast %53 : vector<6xf32> to vector<6x1xf32>
    %55 = tpu.iota {dimensions = array<i32: 1>} : vector<6x8xi32>
    %56 = tpu.iota {dimensions = array<i32: 0>} : vector<6x8xi32>
    %c0_i32_17 = arith.constant 0 : i32
    %57 = vector.broadcast %c0_i32_17 : i32 to vector<6x8xi32>
    %58 = arith.cmpi eq, %55, %57 : vector<6x8xi32>
    %cst_18 = arith.constant 0.000000e+00 : f32
    %59 = vector.shape_cast %48 : vector<6x1xf32> to vector<6x1xf32>
    %60 = vector.broadcast %59 : vector<6x1xf32> to vector<6x8xf32>
    %61 = vector.broadcast %cst_18 : f32 to vector<6x8xf32>
    %62 = arith.select %58, %60, %61 : vector<6x8xi1>, vector<6x8xf32>
    %c1_i32 = arith.constant 1 : i32
    %63 = vector.broadcast %c1_i32 : i32 to vector<6x8xi32>
    %64 = arith.cmpi eq, %55, %63 : vector<6x8xi32>
    %cst_19 = arith.constant 0.000000e+00 : f32
    %65 = vector.shape_cast %52 : vector<6x1xf32> to vector<6x1xf32>
    %66 = vector.broadcast %65 : vector<6x1xf32> to vector<6x8xf32>
    %67 = vector.broadcast %cst_19 : f32 to vector<6x8xf32>
    %68 = arith.select %64, %66, %67 : vector<6x8xi1>, vector<6x8xf32>
    %69 = arith.addf %62, %68 : vector<6x8xf32>
    %c2_i32 = arith.constant 2 : i32
    %70 = vector.broadcast %c2_i32 : i32 to vector<6x8xi32>
    %71 = arith.cmpi eq, %55, %70 : vector<6x8xi32>
    %cst_20 = arith.constant 0.000000e+00 : f32
    %72 = vector.shape_cast %54 : vector<6x1xf32> to vector<6x1xf32>
    %73 = vector.broadcast %72 : vector<6x1xf32> to vector<6x8xf32>
    %74 = vector.broadcast %cst_20 : f32 to vector<6x8xf32>
    %75 = arith.select %71, %73, %74 : vector<6x8xi1>, vector<6x8xf32>
    %76 = arith.addf %69, %75 : vector<6x8xf32>
    %c3_i32 = arith.constant 3 : i32
    %77 = vector.broadcast %c3_i32 : i32 to vector<6x8xi32>
    %78 = arith.cmpi eq, %55, %77 : vector<6x8xi32>
    %c0_i32_21 = arith.constant 0 : i32
    %79 = vector.broadcast %c0_i32_21 : i32 to vector<6x8xi32>
    %80 = arith.cmpi eq, %56, %79 : vector<6x8xi32>
    %81 = arith.andi %78, %80 : vector<6x8xi1>
    %cst_22 = arith.constant 0.000000e+00 : f32
    %82 = vector.shape_cast %39 : vector<1x1xf32> to vector<1x1xf32>
    %83 = vector.broadcast %82 : vector<1x1xf32> to vector<6x8xf32>
    %84 = vector.broadcast %cst_22 : f32 to vector<6x8xf32>
    %85 = arith.select %81, %83, %84 : vector<6x8xi1>, vector<6x8xf32>
    %86 = arith.addf %76, %85 : vector<6x8xf32>
    %c4_i32 = arith.constant 4 : i32
    %87 = vector.broadcast %c4_i32 : i32 to vector<6x8xi32>
    %88 = arith.cmpi eq, %55, %87 : vector<6x8xi32>
    %c0_i32_23 = arith.constant 0 : i32
    %89 = vector.broadcast %c0_i32_23 : i32 to vector<6x8xi32>
    %90 = arith.cmpi eq, %56, %89 : vector<6x8xi32>
    %91 = arith.andi %88, %90 : vector<6x8xi1>
    %cst_24 = arith.constant 0.000000e+00 : f32
    %92 = vector.shape_cast %45 : vector<1x1xf32> to vector<1x1xf32>
    %93 = vector.broadcast %92 : vector<1x1xf32> to vector<6x8xf32>
    %94 = vector.broadcast %cst_24 : f32 to vector<6x8xf32>
    %95 = arith.select %91, %93, %94 : vector<6x8xi1>, vector<6x8xf32>
    %96 = arith.addf %86, %95 : vector<6x8xf32>
    %c0_25 = arith.constant 0 : index
    %c0_26 = arith.constant 0 : index
    %c0_27 = arith.constant 0 : index
    %c0_28 = arith.constant 0 : index
    %97 = vector.load %arg5[%c0_25, %c0_26, %c0_27, %c0_28] : memref<1x1x6x8xf32, #tpu.memory_space<vmem>>, vector<1x1x6x8xf32>
    %98 = vector.shape_cast %96 : vector<6x8xf32> to vector<1x1x6x8xf32>
    %99 = arith.addf %97, %98 : vector<1x1x6x8xf32>
    %c0_29 = arith.constant 0 : index
    %c0_30 = arith.constant 0 : index
    %c0_31 = arith.constant 0 : index
    %c0_32 = arith.constant 0 : index
    %100 = vector.load %arg5[%c0_29, %c0_30, %c0_31, %c0_32] : memref<1x1x6x8xf32, #tpu.memory_space<vmem>>, vector<1x1x6x8xf32>
    tpu.vector_store %arg5[%c0_29, %c0_30, %c0_31, %c0_32], %99 {strides = array<i32>} : memref<1x1x6x8xf32, #tpu.memory_space<vmem>>, vector<1x1x6x8xf32>,
    return
  }
  func.func @transform_0(%arg0: i32, %arg1: i32, %arg2: i32) -> (i32, i32, i32) {
    %c1_i32 = arith.constant 1 : i32
    %0 = arith.muli %arg1, %c1_i32 : i32
    %1 = arith.addi %0, %arg2 : i32
    %c0_i32 = arith.constant 0 : i32
    %c0_i32_0 = arith.constant 0 : i32
    return %arg0, %c0_i32, %1 : i32, i32, i32
  }
  func.func @transform_1(%arg0: i32, %arg1: i32, %arg2: i32) -> (i32, i32, i32) {
    %c1_i32 = arith.constant 1 : i32
    %0 = arith.muli %arg1, %c1_i32 : i32
    %1 = arith.addi %0, %arg2 : i32
    %c0_i32 = arith.constant 0 : i32
    %c0_i32_0 = arith.constant 0 : i32
    return %arg0, %c0_i32, %1 : i32, i32, i32
  }
  func.func @transform_2(%arg0: i32, %arg1: i32, %arg2: i32) -> (i32, i32, i32, i32) {
    %c0_i32 = arith.constant 0 : i32
    %c0_i32_0 = arith.constant 0 : i32
    %c0_i32_1 = arith.constant 0 : i32
    return %arg0, %arg1, %c0_i32, %c0_i32_0 : i32, i32, i32, i32
  }
}

</mosaic_0001>

<llo_original>
// kernel: tpu_custom_call.1
$region0: #{tpu_custom_call.1}
  #allocation0 [shape = 'u32[]', space=smem, size = 0x4, offset = 0x4, fixed_abs, tag = 'smem constant byte address 0x4 - core index']
  #allocation1 [shape = 'u32[144,128]{1,0:T(1,128)}', space=vmem, size = 0x12000, scoped, tag = 'internal scratch']
  %s0 = inlined_call_operand.vmem [shape: f32[2,6,256], index: 0, kind: input, shape index: {}]
  %s1 = inlined_call_operand.vmem [shape: s32[2,1,256], index: 1, kind: input, shape index: {}]
  %s2 = inlined_call_operand.vmem [shape: f32[2,1,6,8], index: 2, kind: output, shape index: {}]
  %s3 = sld [smem:[#allocation0]]
  $region45: #{tpu_custom_call.1} parent=0
    _
  %s5 = ssub.s32 1, %s3
  %s6 = scalar_select 0, %s5, %s3
  loop: start=0, step=1, limit=4
  $region2: #{tpu_custom_call.1} parent=0 // loop_pre_header
    _
  $region3: #{tpu_custom_call.1} parent=0 // loop_header
    %s8 = sphi 0, %s12
    %p9 = scmp.ge.s32.totalorder %s8, 4
    %s15 = sphi 0, %s34
    %s16 = sphi 0, %s30
    %s17 = sphi 0, %s26
    %s18 = sphi 0, %s15
    %s19 = sphi 0, %s16
    %s20 = sphi 0, %s17
    %s21 = sphi 0, %s18
    %s22 = sphi 0, %s19
    %s23 = sphi 0, %s20
    %s41 = sphi 0, %s43
    %s44 = sphi 0, %s41
    %s45 = sphi 0, %s44
    %s61 = sphi 0, %s45
    %s71 = sphi 0, %s73
    %s74 = sphi 0, %s71
    %s75 = sphi 0, %s74
    %s91 = sphi 0, %s75
    %s99 = sphi 0, %s101
    %s102 = sphi 0, %s99
    %s103 = sphi 0, %s102
    %s119 = sphi 0, %s103
  $region4: #{tpu_custom_call.1} parent=0 // loop_header_branch
    %11 = sbr.rel (%p9) target = $region8
  $region5: #{tpu_custom_call.1} parent=0 // loop_body
    %s13 = ssub.s32 %s8, 1
    %s14 = ssub.s32 %s8, 2
    %s24 = sadd.s32 1, %s17
    %p25 = scmp.ge.s32.totalorder %s24, 1
    %s26 = scalar_select %p25, 0, %s24
    %s27 = sadd.s32 1, %s16
    %s28 = scalar_select %p25, %s27, %s16
    %p29 = scmp.ge.s32.totalorder %s28, 1
    %s30 = scalar_select %p29, 0, %s28
    %s31 = sadd.s32 1, %s15
    %s32 = scalar_select %p29, %s31, %s15
    %p33 = scmp.ge.s32.totalorder %s32, 2
    %s34 = scalar_select %p33, 0, %s32
    %s35 = sadd.s32 %s16, %s17
    %s36 = sadd.s32 %s30, %s26
    %s37 = ssub.s32 %s15, %s34
    %s38 = ssub.s32 %s35, %s36
    %s39 = sor.u32 %s37, %s38
    %p40 = scmp.eq.s32.totalorder %s39, 0
    %s42 = sadd.s32 %s41, 1
    %s43 = scalar_select %p40, %s41, %s42
    %p46 = pneg %p40
    %p47 = scmp.eq.s32.totalorder %s8, 1
    %p48 = por %p46, %p47
    %p49 = scmp.ne.s32.totalorder %s41, %s44
    %p50 = scmp.eq.s32.totalorder %s8, 0
    %p51 = por %p49, %p50
    %p52 = scmp.ne.s32.totalorder %s41, %s44
    %p53 = scmp.eq.s32.totalorder %s13, 1
    %p54 = por %p52, %p53
    %p55 = scmp.ne.s32.totalorder %s44, %s45
    %p56 = scmp.eq.s32.totalorder %s13, 0
    %p57 = por %p55, %p56
    %p58 = scmp.ne.s32.totalorder %s44, %s45
    %p59 = scmp.eq.s32.totalorder %s14, 1
    %p60 = por %p58, %p59
    %p62 = scmp.ne.s32.totalorder %s45, %s61
    %p63 = scmp.eq.s32.totalorder %s14, 0
    %p64 = por %p62, %p63
    %s65 = sadd.s32 %s16, %s17
    %s66 = sadd.s32 %s30, %s26
    %s67 = ssub.s32 %s15, %s34
    %s68 = ssub.s32 %s65, %s66
    %s69 = sor.u32 %s67, %s68
    %p70 = scmp.eq.s32.totalorder %s69, 0
    %s72 = sadd.s32 %s71, 1
    %s73 = scalar_select %p70, %s71, %s72
    %p76 = pneg %p70
    %p77 = scmp.eq.s32.totalorder %s8, 1
    %p78 = por %p76, %p77
    %p79 = scmp.ne.s32.totalorder %s71, %s74
    %p80 = scmp.eq.s32.totalorder %s8, 0
    %p81 = por %p79, %p80
    %p82 = scmp.ne.s32.totalorder %s71, %s74
    %p83 = scmp.eq.s32.totalorder %s13, 1
    %p84 = por %p82, %p83
    %p85 = scmp.ne.s32.totalorder %s74, %s75
    %p86 = scmp.eq.s32.totalorder %s13, 0
    %p87 = por %p85, %p86
    %p88 = scmp.ne.s32.totalorder %s74, %s75
    %p89 = scmp.eq.s32.totalorder %s14, 1
    %p90 = por %p88, %p89
    %p92 = scmp.ne.s32.totalorder %s75, %s91
    %p93 = scmp.eq.s32.totalorder %s14, 0
    %p94 = por %p92, %p93
    %s95 = ssub.s32 %s15, %s34
    %s96 = ssub.s32 %s16, %s30
    %s97 = sor.u32 %s95, %s96
    %p98 = scmp.eq.s32.totalorder %s97, 0
    %s100 = sadd.s32 %s99, 1
    %s101 = scalar_select %p98, %s99, %s100
    %p104 = pneg %p98
    %p105 = scmp.eq.s32.totalorder %s8, 1
    %p106 = por %p104, %p105
    %p107 = scmp.ne.s32.totalorder %s99, %s102
    %p108 = scmp.eq.s32.totalorder %s8, 0
    %p109 = por %p107, %p108
    %p110 = scmp.ne.s32.totalorder %s99, %s102
    %p111 = scmp.eq.s32.totalorder %s13, 1
    %p112 = por %p110, %p111
    %p113 = scmp.ne.s32.totalorder %s102, %s103
    %p114 = scmp.eq.s32.totalorder %s13, 0
    %p115 = por %p113, %p114
    %p116 = scmp.ne.s32.totalorder %s102, %s103
    %p117 = scmp.eq.s32.totalorder %s14, 1
    %p118 = por %p116, %p117
    %p120 = scmp.ne.s32.totalorder %s103, %s119
    %p121 = scmp.eq.s32.totalorder %s14, 0
    %p122 = por %p120, %p121
    %p123 = scmp.le.s32.totalorder 1, %s8
    %p124 = scmp.lt.s32.totalorder %s8, 3
    %p125 = pnand %p123, %p124
    %p126 = pneg %p125
    // Predicated region
    $region9: #{tpu_custom_call.1} parent=5 // pred_check
      _
    $region10: #{tpu_custom_call.1} parent=5 // pred_check_branch
      %128 = sbr.rel (%p125) target = $region12
    $region11: #{tpu_custom_call.1} parent=5 // pred_region
      %s129 = ssub.s32 %s8, 1
    $region12: #{tpu_custom_call.1} parent=5 // pred_fallthru
      _
    %p130 = scmp.lt.s32.totalorder %s8, 2
    // Predicated region
    $region13: #{tpu_custom_call.1} parent=5 // pred_check
      %p131 = pneg %p130
    $region14: #{tpu_custom_call.1} parent=5 // pred_check_branch
      %133 = sbr.rel (%p131) target = $region16
    $region15: #{tpu_custom_call.1} parent=5 // pred_region
      // Predicated region
      $region17: #{tpu_custom_call.1} parent=15 // pred_check
        %p134 = pneg %p51
      $region18: #{tpu_custom_call.1} parent=15 // pred_check_branch
        %136 = sbr.rel (%p134) target = $region20
      $region19: #{tpu_custom_call.1} parent=15 // pred_region
        %s137 = sadd.s32 %s16, %s17
        %s138 = smul.u32 2, %s137
        %p139 = scmp.lt.s32.totalorder %s15, 1
        %s140 = scalar_select %p139, %s15, 1
        %p141 = scmp.lt.s32.totalorder %s138, 1
        %s142 = scalar_select %p141, %s138, 1
        %s143 = smul.addr %s140, 2
        %s144 = sadd.s32 %s142, %s143
        %s145 = smul.addr %s144, 8
        %s146 = scalar_lea.vmem %s0, %s145
        %s147 = sadd.s32 %s16, %s17
        %s148 = smul.u32 2, %s147
      $region20: #{tpu_custom_call.1} parent=15 // pred_fallthru
        _
      // Predicated region
      $region21: #{tpu_custom_call.1} parent=15 // pred_check
        %p149 = pneg %p81
      $region22: #{tpu_custom_call.1} parent=15 // pred_check_branch
        %151 = sbr.rel (%p149) target = $region24
      $region23: #{tpu_custom_call.1} parent=15 // pred_region
        %s152 = sadd.s32 %s16, %s17
        %s153 = smul.u32 2, %s152
        %p154 = scmp.lt.s32.totalorder %s15, 1
        %s155 = scalar_select %p154, %s15, 1
        %p156 = scmp.lt.s32.totalorder %s153, 1
        %s157 = scalar_select %p156, %s153, 1
        %s158 = smul.addr %s155, 2
        %s159 = sadd.s32 %s157, %s158
        %s160 = scalar_lea.vmem %s1, %s159
        %s161 = sadd.s32 %s16, %s17
        %s162 = smul.u32 2, %s161
      $region24: #{tpu_custom_call.1} parent=15 // pred_fallthru
        _
    $region16: #{tpu_custom_call.1} parent=5 // pred_fallthru
      _
    %p163 = scmp.le.s32.totalorder 1, %s8
    %p164 = scmp.lt.s32.totalorder %s8, 3
    %p165 = pnand %p163, %p164
    %p166 = pneg %p165
    // Predicated region
    $region25: #{tpu_custom_call.1} parent=5 // pred_check
      _
    $region26: #{tpu_custom_call.1} parent=5 // pred_check_branch
      %168 = sbr.rel (%p165) target = $region28
    $region27: #{tpu_custom_call.1} parent=5 // pred_region
      %s169 = ssub.s32 %s8, 1
      %s170 = sadd.s32 %s19, %s20
      %s171 = smul.u32 2, %s170
      %p172 = scmp.lt.s32.totalorder %s18, 1
      %s173 = scalar_select %p172, %s18, 1
      %p174 = scmp.lt.s32.totalorder %s171, 1
      %s175 = scalar_select %p174, %s171, 1
      %s176 = smul.addr %s173, 2
      %s177 = sadd.s32 %s175, %s176
      %s178 = smul.addr %s177, 8
      %s179 = scalar_lea.vmem %s0, %s178
      %p180 = pneg %p57
      %p181 = pneg %p54
      %s182 = sadd.s32 %s19, %s20
      %s183 = smul.u32 2, %s182
      %p184 = scmp.lt.s32.totalorder %s18, 1
      %s185 = scalar_select %p184, %s18, 1
      %p186 = scmp.lt.s32.totalorder %s183, 1
      %s187 = scalar_select %p186, %s183, 1
      %s188 = smul.addr %s185, 2
      %s189 = sadd.s32 %s187, %s188
      %s190 = scalar_lea.vmem %s1, %s189
      %p191 = pneg %p87
      %p192 = pneg %p84
      %p193 = pneg %p115
      %p194 = pneg %p112
      %p195 = scmp.lt.s32.totalorder %s18, 1
      %s196 = scalar_select %p195, %s18, 1
      %p197 = scmp.lt.s32.totalorder %s19, 0
      %s198 = scalar_select %p197, %s19, 0
      %s199 = sadd.s32 %s198, %s196
      %s200 = smul.addr %s199, 8
      %s201 = scalar_lea.vmem %s2, %s200
      %s202 = sadd.s32 %s19, %s20
      %s203 = smul.u32 2, %s202
      %p204 = scmp.lt.s32.totalorder %s18, 1
      %s205 = scalar_select %p204, %s18, 1
      %p206 = scmp.lt.s32.totalorder %s203, 1
      %s207 = scalar_select %p206, %s203, 1
      %s208 = smul.addr %s205, 2
      %s209 = sadd.s32 %s207, %s208
      %s210 = smul.addr %s209, 8
      %s211 = scalar_lea.vmem %s0, %s210
      %s212 = sadd.s32 %s19, %s20
      %s213 = smul.u32 2, %s212
      %s214 = sadd.s32 %s19, %s20
      %s215 = smul.u32 2, %s214
      %p216 = scmp.lt.s32.totalorder %s18, 1
      %s217 = scalar_select %p216, %s18, 1
      %p218 = scmp.lt.s32.totalorder %s215, 1
      %s219 = scalar_select %p218, %s215, 1
      %s220 = smul.addr %s217, 2
      %s221 = sadd.s32 %s219, %s220
      %s222 = scalar_lea.vmem %s1, %s221
      %s223 = sadd.s32 %s19, %s20
      %s224 = smul.u32 2, %s223
      %p225 = scmp.lt.s32.totalorder %s18, 1
      %s226 = scalar_select %p225, %s18, 1
      %p227 = scmp.lt.s32.totalorder %s19, 0
      %s228 = scalar_select %p227, %s19, 0
      %s229 = sadd.s32 %s228, %s226
      %s230 = smul.addr %s229, 8
      %s231 = scalar_lea.vmem %s2, %s230
      %p232 = scmp.eq.s32.totalorder %s20, 0
      // Predicated region
      $region29: #{tpu_custom_call.1} parent=27 // pred_check
        %p233 = pneg %p232
      $region30: #{tpu_custom_call.1} parent=27 // pred_check_branch
        %235 = sbr.rel (%p233) target = $region32
      $region31: #{tpu_custom_call.1} parent=27 // pred_region
        %vm236 = vcmask 62464
        %237 = vst.msk [vmem:[%s231] sm:$0x3f] %vm236, 0.0
      $region32: #{tpu_custom_call.1} parent=27 // pred_fallthru
        _
      %v238 = vld [vmem:[%s211] sm:$0x3f]
      %v239 = vld [vmem:[%s211 + $0x8] sm:$0x3f]
      %v240 = vld [vmem:[%s222] sm:$0x3]
      %vm241 = vcmp.ne.s32.totalorder %v240, 255
      %v242 = vsel %vm241, 1, 0
      %v243 = vcvt.s32.f32 %v242
      %vm244 = vcmask 1045504
      %v245 = vsel %vm244, %v238, -inf
      %v246 = vrot.slane %v245, 4
      %v247 = vmax.f32 %v245, %v246
      %v248 = vrot.slane %v247, 2
      %v249 = vmax.f32 %v247, %v248
      %v250 = vrot.slane %v249, 1
      %v251 = vmax.f32 %v249, %v250
      %v252 = vsel %vm244, %v239, -inf
      %v253 = vrot.slane %v252, 4
      %v254 = vmax.f32 %v252, %v253
      %v255 = vrot.slane %v254, 2
      %v256 = vmax.f32 %v254, %v255
      %v257 = vrot.slane %v256, 1
      %v258 = vmax.f32 %v256, %v257
      %v259 = vsub.f32 %v238, %v251
      %v260 = vsub.f32 %v239, %v258
      %v261 = vmul.f32 %v259, 1.442695
      %v262 = vpow.pop %v261
      %v263 = vmul.f32 %v260, 1.442695
      %v264 = vpow.pop %v263
      %v265 = vsel %vm244, %v262, 0.0
      %v266 = vrot.slane %v265, 4
      %v267 = vadd.f32 %v265, %v266
      %v268 = vrot.slane %v267, 2
      %v269 = vadd.f32 %v267, %v268
      %v270 = vrot.slane %v269, 1
      %v271 = vadd.f32 %v269, %v270
      %v272 = vsel %vm244, %v264, 0.0
      %v273 = vrot.slane %v272, 4
      %v274 = vadd.f32 %v272, %v273
      %v275 = vrot.slane %v274, 2
      %v276 = vadd.f32 %v274, %v275
      %v277 = vrot.slane %v276, 1
      %v278 = vadd.f32 %v276, %v277
      %v279 = vrcp.pop %v271
      %v280 = vmul.f32 1.0, %v279
      %v281 = vrcp.pop %v278
      %v282 = vmul.f32 1.0, %v281
      %v283 = vlog2.pop %v271
      %v284 = vmul.f32 %v283, 0.6931472
      %v285 = vlog2.pop %v278
      %v286 = vmul.f32 %v285, 0.6931472
      %v287 = vadd.f32 %v284, %v251
      %v288 = vadd.f32 %v286, %v258
      %v289 = vmul.f32 %v262, %v280
      %v290 = vmul.f32 %v264, %v282
      %v291 = vlaneseq
      %v292 = vshrl.u32 %v291, 7
      %v293 = vlaneseq
      %v294 = vshrl.u32 %v293, 7
      %v295 = vsub.s32 0, %v294
      %v296 = vrot.slane %v240, %v295
      %v297 = vlaneseq
      %v298 = vshrl.u32 %v297, 7
      %v299 = vsub.s32 1, %v298
      %v300 = vrot.slane %v240, %v299
      %vm301 = vcmp.eq.s32.totalorder %v292, %v296
      %vm302 = vcmp.eq.s32.totalorder %v292, %v300
      %v304 = vlaneseq
      %v305 = vshrl.u32 %v304, 7
      %v306 = vsub.s32 0, %v305
      %v307 = vrot.slane %v243, %v306
      %v308 = vlaneseq
      %v309 = vshrl.u32 %v308, 7
      %v310 = vsub.s32 1, %v309
      %v311 = vrot.slane %v243, %v310
      %v314 = vsel %vm301, %v307, 0.0
      %v315 = vsel %vm302, %v311, 0.0
      %v316 = vmul.f32 %v238, %v314
      %v317 = vmul.f32 %v239, %v315
      %v318 = vsel %vm244, %v316, 0.0
      %v319 = vrot.slane %v318, 4
      %v320 = vadd.f32 %v318, %v319
      %v321 = vrot.slane %v320, 2
      %v322 = vadd.f32 %v320, %v321
      %v323 = vrot.slane %v322, 1
      %v324 = vadd.f32 %v322, %v323
      %v325 = vsel %vm244, %v317, 0.0
      %v326 = vrot.slane %v325, 4
      %v327 = vadd.f32 %v325, %v326
      %v328 = vrot.slane %v327, 2
      %v329 = vadd.f32 %v327, %v328
      %v330 = vrot.slane %v329, 1
      %v331 = vadd.f32 %v329, %v330
      %v332 = vsel %vm244, %v238, 0.0
      %v333 = vrot.slane %v332, 4
      %v334 = vadd.f32 %v332, %v333
      %v335 = vrot.slane %v334, 2
      %v336 = vadd.f32 %v334, %v335
      %v337 = vrot.slane %v336, 1
      %v338 = vadd.f32 %v336, %v337
      %v339 = vsel %vm244, %v239, 0.0
      %v340 = vrot.slane %v339, 4
      %v341 = vadd.f32 %v339, %v340
      %v342 = vrot.slane %v341, 2
      %v343 = vadd.f32 %v341, %v342
      %v344 = vrot.slane %v343, 1
      %v345 = vadd.f32 %v343, %v344
      %v346 = vmul.f32 %v287, %v307
      %v347 = vmul.f32 %v288, %v311
      %v348 = vsub.f32 %v346, %v324
      %v349 = vsub.f32 %v347, %v331
      %vm350 = vcmask 1040384
      %v351 = vsel %vm350, %v348, 0.0
      %v352 = vsel %vm350, %v349, 0.0
      %v353 = vadd.f32 %v351, %v352
      %354 = vadd.xlane.f32.xlu0 %v353
      %v355 = vpop.xlane.xlu0 %354
      %v356 = vmul.f32 %v287, 6.0
      %v357 = vmul.f32 %v288, 6.0
      %v358 = vsub.f32 %v356, %v338
      %v359 = vsub.f32 %v357, %v345
      %v360 = vmul.f32 %v358, %v307
      %v361 = vmul.f32 %v359, %v311
      %v362 = vsel %vm350, %v360, 0.0
      %v363 = vsel %vm350, %v361, 0.0
      %v364 = vadd.f32 %v362, %v363
      %365 = vadd.xlane.f32.xlu0 %v364
      %v366 = vpop.xlane.xlu0 %365
      %v367 = vmul.f32 %v289, %v314
      %v368 = vmul.f32 %v290, %v315
      %v369 = vsel %vm244, %v367, 0.0
      %v370 = vsel %vm244, %v368, 0.0
      %v371 = vadd.f32 %v369, %v370
      %372 = vadd.xlane.f32.xlu0 %v371
      %v373 = vpop.xlane.xlu0 %372
      %v374 = vmul.f32 %v289, %v307
      %v375 = vmul.f32 %v290, %v311
      %v376 = vsel %vm244, %v374, 0.0
      %v377 = vsel %vm244, %v375, 0.0
      %v378 = vadd.f32 %v376, %v377
      %379 = vadd.xlane.f32.xlu0 %v378
      %v380 = vpop.xlane.xlu0 %379
      %v381 = vsel %vm244, %v314, 0.0
      %v382 = vsel %vm244, %v315, 0.0
      %v383 = vadd.f32 %v381, %v382
      %384 = vadd.xlane.f32.xlu0 %v383
      %v385 = vpop.xlane.xlu0 %384
      %v386 = vlaneseq
      %v387 = vand.u32 %v386, 127
      %vm388 = vcmp.eq.s32.totalorder %v387, 0
      %v389 = vsel %vm388, %v373, 0.0
      %vm390 = vcmp.eq.s32.totalorder %v387, 1
      %v391 = vsel %vm390, %v380, 0.0
      %v392 = vadd.f32 %v389, %v391
      %vm393 = vcmp.eq.s32.totalorder %v387, 2
      %v394 = vsel %vm393, %v385, 0.0
      %v395 = vadd.f32 %v392, %v394
      %vm396 = vcmp.eq.s32.totalorder %v387, 3
      %vm397 = vcmp.eq.s32.totalorder %v292, 0
      %vm398 = vmand %vm396, %vm397
      %v399 = vlaneseq
      %v400 = vshrl.u32 %v399, 7
      %v401 = vsub.s32 0, %v400
      %v402 = vrot.slane %v355, %v401
      %v403 = vsel %vm398, %v402, 0.0
      %v404 = vadd.f32 %v395, %v403
      %vm405 = vcmp.eq.s32.totalorder %v387, 4
      %vm406 = vmand %vm405, %vm397
      %v407 = vlaneseq
      %v408 = vshrl.u32 %v407, 7
      %v409 = vsub.s32 0, %v408
      %v410 = vrot.slane %v366, %v409
      %v411 = vsel %vm406, %v410, 0.0
      %v412 = vadd.f32 %v404, %v411
      %v413 = vld [vmem:[%s231] sm:$0x3f]
      %v414 = vadd.f32 %v413, %v412
      %vm415 = vcmask 62464
      %416 = vst.msk [vmem:[%s231] sm:$0x3f] %vm415, %v414
      %p417 = scmp.lt.s32.totalorder %s18, 1
      %s418 = scalar_select %p417, %s18, 1
      %p419 = scmp.lt.s32.totalorder %s19, 0
      %s420 = scalar_select %p419, %s19, 0
      %s421 = sadd.s32 %s420, %s418
      %s422 = smul.addr %s421, 8
      %s423 = scalar_lea.vmem %s2, %s422
      // Predicated region
      $region33: #{tpu_custom_call.1} parent=27 // pred_check
        %p424 = pneg %p112
      $region34: #{tpu_custom_call.1} parent=27 // pred_check_branch
        %426 = sbr.rel (%p424) target = $region36
      $region35: #{tpu_custom_call.1} parent=27 // pred_region
        _
      $region36: #{tpu_custom_call.1} parent=27 // pred_fallthru
        _
    $region28: #{tpu_custom_call.1} parent=5 // pred_fallthru
      _
    %p427 = scmp.le.s32.totalorder 2, %s8
    // Predicated region
    $region37: #{tpu_custom_call.1} parent=5 // pred_check
      %p428 = pneg %p427
    $region38: #{tpu_custom_call.1} parent=5 // pred_check_branch
      %430 = sbr.rel (%p428) target = $region40
    $region39: #{tpu_custom_call.1} parent=5 // pred_region
      %s431 = ssub.s32 %s8, 2
      // Predicated region
      $region41: #{tpu_custom_call.1} parent=39 // pred_check
        %p432 = pneg %p118
      $region42: #{tpu_custom_call.1} parent=39 // pred_check_branch
        %434 = sbr.rel (%p432) target = $region44
      $region43: #{tpu_custom_call.1} parent=39 // pred_region
        %p435 = scmp.lt.s32.totalorder %s21, 1
        %s436 = scalar_select %p435, %s21, 1
        %p437 = scmp.lt.s32.totalorder %s22, 0
        %s438 = scalar_select %p437, %s22, 0
        %s439 = sadd.s32 %s438, %s436
        %s440 = smul.addr %s439, 8
        %s441 = scalar_lea.vmem %s2, %s440
      $region44: #{tpu_custom_call.1} parent=39 // pred_fallthru
        _
    $region40: #{tpu_custom_call.1} parent=5 // pred_fallthru
      _
  $region6: #{tpu_custom_call.1} parent=0 // loop_footer
    %s12 = sadd.s32 1, %s8
  $region7: #{tpu_custom_call.1} parent=0 // loop_footer_branch
    %7 = sbr.rel target = $region3
  $region8: #{tpu_custom_call.1} parent=0 // loop_exit
    _

</llo_original>
